<compile_context>
chip_gen: v7x
topology: tpu7x:2x2x1
jax: 0.10.0
libtpu: 0.0.40
codegen_flags: <defaults>
</compile_context>

<pallas_src>
import jax
import jax.numpy as jnp
from jax.experimental import pallas as pl
from jax.experimental.pallas import tpu as pltpu


def _gated_spatial_attention_kernel(
    x_ref,      # (rows, Ds+Dg)   fused [spat | gate] rows, rows = block_n*K
    filt_ref,   # (block_n, C, HW)
    w1_ref,     # (Ds+Dg, Hs+Hg)  block-diagonal fused first layer
    b1_ref,     # (1, Hs+Hg)      f32
    w2s_ref,    # (Hs+Hg, HW)     rows Hs.. are zero
    b2s_ref,    # (1, HW)         f32
    w2g_ref,    # (Hs+Hg, C)      rows ..Hs are zero
    b2g_ref,    # (1, C)          f32
    out_ref,    # (rows, C)
):
    f32 = jnp.float32
    bn, c_dim, hw = filt_ref.shape
    rows = x_ref.shape[0]
    k = rows // bn

    # ---- fused MLPs: one wide first-layer GEMM over block_n*K rows --------
    x = x_ref[...]
    h1 = jnp.dot(x, w1_ref[...], preferred_element_type=f32) + b1_ref[...]
    h1 = jnp.maximum(h1, 0.0)                       # ReLU in f32
    h1m = h1.astype(w2s_ref.dtype)

    # Spatial-attention logits (rows, HW) and gate logits (rows, C).  The
    # zero weight rows make these exactly equal to the unfused per-MLP GEMMs.
    logits = jnp.dot(h1m, w2s_ref[...], preferred_element_type=f32) + b2s_ref[...]
    glogits = jnp.dot(h1m, w2g_ref[...], preferred_element_type=f32) + b2g_ref[...]
    gattn = jax.nn.sigmoid(glogits)                 # (rows, C) f32

    # ---- deferred softmax: normalize AFTER the pooling (linearity) --------
    m = jnp.max(logits, axis=-1, keepdims=True)
    e = jnp.exp(logits - m)                         # (rows, HW) f32
    denom = jnp.sum(e, axis=-1, keepdims=True)      # (rows, 1)

    # ---- weighted spatial pooling, statically unrolled over the C(=4)
    # output channels so only (rows, HW)-sized values stay live (no
    # (rows, C, HW) broadcast blow-up, no 4-D size-1 relayouts):
    #   spat_map[n*K + j, c] = sum_hw e[n*K + j, hw] * filt[n, c, hw]
    e3 = e.reshape(bn, k, hw)
    cols = []
    for c in range(c_dim):                          # C known at trace time
        f_c = filt_ref[:, c, :].astype(f32)         # (bn, hw)
        cols.append(jnp.sum(e3 * f_c[:, None, :], axis=-1))      # (bn, k)
    spat_map = jnp.stack(cols, axis=-1).reshape(rows, c_dim)     # (rows, C)

    # approx=True would move this to the otherwise-idle EUP; kept exact so the
    # f32 path matches the pure-JAX reference to 1e-5.
    inv_denom = pl.reciprocal(denom, approx=False)  # (rows, 1)

    out_ref[...] = (gattn * spat_map * inv_denom).astype(out_ref.dtype)


def _choose_block_n(N, K, C, HW, filt_itemsize, row_mult):
    """Pick block_n (samples per grid step).

    Prefers the largest block_n dividing N whose per-step filters tile is
    <= ~2 MiB while still leaving >= 2 grid steps, so BlockSpec
    double-buffering overlaps the dominant filters DMA with compute and the
    'parallel' axis can shard across v7x's two TensorCores.  rows = block_n*K
    must be a multiple of `row_mult` (8 for f32, 16 for bf16) unless the
    block covers all of N (toy shapes fall back to a single full block).
    """
    target = 2 << 20
    valid = [bn for bn in range(1, N + 1)
             if N % bn == 0 and (bn == N or (bn * K) % row_mult == 0)]
    sized = [bn for bn in valid
             if N // bn >= 2 and bn * C * HW * filt_itemsize <= target]
    if sized:
        return max(sized)          # biggest tile that still pipelines
    return max(valid)              # tiny N: single full block


def gated_spatial_attention(spat_in, gate_in, filters, params,
                            *, block_n=None, matmul_dtype=jnp.bfloat16):
    """spat_in: (N,K,Ds)  gate_in: (N,K,Dg)  filters: (N,C,H,W)  -> (N,K,C).

    block_n: samples per grid step (auto-chosen by default; rows = block_n*K
             should be a multiple of 128/256 at production sizes for MXU
             occupancy and must be a multiple of 16 for bf16 / 8 for f32
             unless block_n == N).
    matmul_dtype: dtype of MXU operands (inputs/weights/filters).  bf16 is
             the default (halves the dominant filters HBM stream); the
             accumulation is always f32.
    """
    N, K, Ds = spat_in.shape
    _, _, Dg = gate_in.shape
    _, C, H, W = filters.shape
    HW = H * W

    (w1s, b1s, w2s, b2s, w1g, b1g, w2g, b2g) = params
    Hs = w1s.shape[1]
    Hg = w1g.shape[1]

    cast = lambda a: a.astype(matmul_dtype)

    # --- fuse the two MLP first layers: block-diagonal weight on [spat|gate]
    w1 = jnp.zeros((Ds + Dg, Hs + Hg), jnp.float32)
    w1 = w1.at[:Ds, :Hs].set(w1s).at[Ds:, Hs:].set(w1g)
    b1 = jnp.concatenate([b1s, b1g], axis=-1)                       # (1, Hs+Hg)
    # --- second layers zero-padded to the fused hidden width (exact math) --
    w2s_p = jnp.zeros((Hs + Hg, HW), jnp.float32).at[:Hs, :].set(w2s)
    w2g_p = jnp.zeros((Hs + Hg, C), jnp.float32).at[Hs:, :].set(w2g)

    # Row-major 2-D views so each MLP GEMM sees block_n*K rows at once.
    x2d = cast(jnp.concatenate([spat_in, gate_in], axis=-1).reshape(N * K, Ds + Dg))
    # Filters are the dominant HBM stream; bf16 halves that DMA.
    filt2d = cast(filters.reshape(N, C, HW))

    itemsize = jnp.dtype(matmul_dtype).itemsize
    row_mult = 32 // itemsize          # sublane tile: 8 rows f32, 16 rows bf16
    if block_n is None:
        block_n = _choose_block_n(N, K, C, HW, itemsize, row_mult)
    assert N % block_n == 0, "block_n must divide N"
    rows = block_n * K
    assert block_n == N or rows % row_mult == 0, (
        f"rows={rows} must be a multiple of {row_mult} for {matmul_dtype} "
        f"blocks (or block_n == N)")
    n_steps = N // block_n

    const = lambda shape: pl.BlockSpec(shape, lambda n: (0,) * len(shape))

    grid_spec = pltpu.PrefetchScalarGridSpec(
        num_scalar_prefetch=0,
        grid=(n_steps,),
        in_specs=[
            pl.BlockSpec((rows, Ds + Dg), lambda n: (n, 0)),
            pl.BlockSpec((block_n, C, HW), lambda n: (n, 0, 0)),
            const((Ds + Dg, Hs + Hg)), const((1, Hs + Hg)),
            const((Hs + Hg, HW)), const((1, HW)),
            const((Hs + Hg, C)), const((1, C)),
        ],
        out_specs=pl.BlockSpec((rows, C), lambda n: (n, 0)),
    )

    out2d = pl.pallas_call(
        _gated_spatial_attention_kernel,
        out_shape=jax.ShapeDtypeStruct((N * K, C), jnp.float32),
        grid_spec=grid_spec,
        compiler_params=pltpu.CompilerParams(
            dimension_semantics=("parallel",),
            # ~2 MiB filters tile + e/logits/pooling intermediates stay well
            # under 32 MiB; explicit limit keeps v5e (16 MiB default scoped)
            # and v7x (64 MiB physical) on the same tiling.
            vmem_limit_bytes=32 * 1024 * 1024,
        ),
    )(x2d, filt2d,
      cast(w1), b1, cast(w2s_p), b2s, cast(w2g_p), b2g)

    return out2d.reshape(N, K, C)


def _reference(spat_in, gate_in, filters, params):
    (w1s, b1s, w2s, b2s, w1g, b1g, w2g, b2g) = params
    N, C, H, W = filters.shape
    sl = jnp.maximum(spat_in @ w1s + b1s, 0.0) @ w2s + b2s          # (N,K,HW)
    sattn = jax.nn.softmax(sl, axis=-1).reshape(N, -1, 1, H * W)
    gl = jnp.maximum(gate_in @ w1g + b1g, 0.0) @ w2g + b2g          # (N,K,C)
    gattn = jax.nn.sigmoid(gl).reshape(N, -1, C, 1)
    spat_map = (filters.reshape(N, 1, C, H * W) * sattn).sum(-1)    # (N,K,C)
    attn_map = gattn * spat_map.reshape(gattn.shape)
    return attn_map.reshape(N, -1, C)


def _init_params(key, Ds, Dg, Hs, Hg, HW, C):
    ks = jax.random.split(key, 6)
    s = lambda k, fi, fo: jax.random.normal(k, (fi, fo), jnp.float32) / jnp.sqrt(fi)
    w1s = s(ks[0], Ds, Hs); b1s = jnp.zeros((1, Hs), jnp.float32)
    w2s = s(ks[1], Hs, HW); b2s = jnp.zeros((1, HW), jnp.float32)
    w1g = s(ks[2], Dg, Hg); b1g = jnp.zeros((1, Hg), jnp.float32)
    w2g = s(ks[3], Hg, C)
    b2g = jnp.ones((1, C), jnp.float32)   # gate_mlp[-1].bias.data.fill_(1)
    return (w1s, b1s, w2s, b2s, w1g, b1g, w2g, b2g)


if __name__ == "__main__":
    N, K, C, H, W = 2, 4, 4, 16, 16
    Ds = Dg = 32
    Hs = Hg = 32
    HW = H * W

    key = jax.random.PRNGKey(0)
    k1, k2, k3, kp = jax.random.split(key, 4)
    spat_in = jax.random.normal(k1, (N, K, Ds), jnp.float32)
    gate_in = jax.random.normal(k2, (N, K, Dg), jnp.float32)
    filters = jax.random.normal(k3, (N, C, H, W), jnp.float32)
    params = _init_params(kp, Ds, Dg, Hs, Hg, HW, C)

    ref = _reference(spat_in, gate_in, filters, params)

    # Default path (bf16 matmul operands, f32 accumulation): loose check.
    out = gated_spatial_attention(spat_in, gate_in, filters, params)
    out = jax.block_until_ready(out)
    assert out.shape == (N, K, C)
    assert float(jnp.max(jnp.abs(out - ref))) < 0.1, "bf16 path out of tolerance"

    # f32 operand path: tight check against the pure-JAX reference.
    out_f32 = gated_spatial_attention(spat_in, gate_in, filters, params,
                                      matmul_dtype=jnp.float32)
    out_f32 = jax.block_until_ready(out_f32)
    assert jnp.allclose(out_f32, ref, atol=1e-5, rtol=1e-5), "f32 mismatch vs reference"

    print("KERNEL_OK")
</pallas_src>

<mosaic_0001>
module attributes {stable_mosaic.version = 11 : i64} {
  func.func @_gated_spatial_attention_kernel(%arg0: i32, %arg1: memref<8x64xbf16, #tpu.memory_space<vmem>>, %arg2: memref<2x4x256xbf16, #tpu.memory_space<vmem>>, %arg3: memref<64x64xbf16, #tpu.memory_space<vmem>>, %arg4: memref<1x64xf32, #tpu.memory_space<vmem>>, %arg5: memref<64x256xbf16, #tpu.memory_space<vmem>>, %arg6: memref<1x256xf32, #tpu.memory_space<vmem>>, %arg7: memref<64x4xbf16, #tpu.memory_space<vmem>>, %arg8: memref<1x4xf32, #tpu.memory_space<vmem>>, %arg9: memref<8x4xf32, #tpu.memory_space<vmem>>) attributes {dimension_semantics = [#tpu.dimension_semantics<parallel>], iteration_bounds = array<i64: 1>, scalar_prefetch = 0 : i64, scratch_operands = 0 : i64, tpu.core_type = #tpu.core_type<tc>, window_params = [{transform_indices = @transform_0, window_bounds = array<i64: 8, 64>}, {transform_indices = @transform_1, window_bounds = array<i64: 2, 4, 256>}, {pipeline_mode = #tpu.pipeline_mode<synchronous>, transform_indices = @transform_2, window_bounds = array<i64: 64, 64>}, {pipeline_mode = #tpu.pipeline_mode<synchronous>, transform_indices = @transform_3, window_bounds = array<i64: 1, 64>}, {pipeline_mode = #tpu.pipeline_mode<synchronous>, transform_indices = @transform_4, window_bounds = array<i64: 64, 256>}, {pipeline_mode = #tpu.pipeline_mode<synchronous>, transform_indices = @transform_5, window_bounds = array<i64: 1, 256>}, {pipeline_mode = #tpu.pipeline_mode<synchronous>, transform_indices = @transform_6, window_bounds = array<i64: 64, 4>}, {pipeline_mode = #tpu.pipeline_mode<synchronous>, transform_indices = @transform_7, window_bounds = array<i64: 1, 4>}, {transform_indices = @transform_8, window_bounds = array<i64: 8, 4>}]} {
    %c0 = arith.constant 0 : index
    %c0_0 = arith.constant 0 : index
    %0 = vector.load %arg1[%c0, %c0_0] : memref<8x64xbf16, #tpu.memory_space<vmem>>, vector<8x64xbf16>
    %c0_1 = arith.constant 0 : index
    %c0_2 = arith.constant 0 : index
    %1 = vector.load %arg3[%c0_1, %c0_2] : memref<64x64xbf16, #tpu.memory_space<vmem>>, vector<64x64xbf16>
    %cst = arith.constant dense<0.000000e+00> : vector<8x64xf32>
    %2 = tpu.matmul %0, %1, %cst {dimension_numbers = #tpu.dot_dimension_numbers<[1], [0], [0], [1], [0, 0, 1, 1], [], []>} : vector<8x64xbf16>, vector<64x64xbf16>, vector<8x64xf32> -> vector<8x64xf32>
    %c0_3 = arith.constant 0 : index
    %c0_4 = arith.constant 0 : index
    %3 = vector.load %arg4[%c0_3, %c0_4] : memref<1x64xf32, #tpu.memory_space<vmem>>, vector<1x64xf32>
    %4 = vector.broadcast %3 : vector<1x64xf32> to vector<8x64xf32>
    %5 = arith.addf %2, %4 : vector<8x64xf32>
    %cst_5 = arith.constant 0.000000e+00 : f32
    %6 = vector.broadcast %cst_5 : f32 to vector<8x64xf32>
    %7 = arith.maximumf %5, %6 : vector<8x64xf32>
    %8 = arith.truncf %7 : vector<8x64xf32> to vector<8x64xbf16>
    %c0_6 = arith.constant 0 : index
    %c0_7 = arith.constant 0 : index
    %9 = vector.load %arg5[%c0_6, %c0_7] : memref<64x256xbf16, #tpu.memory_space<vmem>>, vector<64x256xbf16>
    %cst_8 = arith.constant dense<0.000000e+00> : vector<8x256xf32>
    %10 = tpu.matmul %8, %9, %cst_8 {dimension_numbers = #tpu.dot_dimension_numbers<[1], [0], [0], [1], [0, 0, 1, 1], [], []>} : vector<8x64xbf16>, vector<64x256xbf16>, vector<8x256xf32> -> vector<8x256xf32>
    %c0_9 = arith.constant 0 : index
    %c0_10 = arith.constant 0 : index
    %11 = vector.load %arg6[%c0_9, %c0_10] : memref<1x256xf32, #tpu.memory_space<vmem>>, vector<1x256xf32>
    %12 = vector.broadcast %11 : vector<1x256xf32> to vector<8x256xf32>
    %13 = arith.addf %10, %12 : vector<8x256xf32>
    %c0_11 = arith.constant 0 : index
    %c0_12 = arith.constant 0 : index
    %14 = vector.load %arg7[%c0_11, %c0_12] : memref<64x4xbf16, #tpu.memory_space<vmem>>, vector<64x4xbf16>
    %cst_13 = arith.constant dense<0.000000e+00> : vector<8x4xf32>
    %15 = tpu.matmul %8, %14, %cst_13 {dimension_numbers = #tpu.dot_dimension_numbers<[1], [0], [0], [1], [0, 0, 1, 1], [], []>} : vector<8x64xbf16>, vector<64x4xbf16>, vector<8x4xf32> -> vector<8x4xf32>
    %c0_14 = arith.constant 0 : index
    %c0_15 = arith.constant 0 : index
    %16 = vector.load %arg8[%c0_14, %c0_15] : memref<1x4xf32, #tpu.memory_space<vmem>>, vector<1x4xf32>
    %17 = vector.broadcast %16 : vector<1x4xf32> to vector<8x4xf32>
    %18 = arith.addf %15, %17 : vector<8x4xf32>
    %19 = arith.negf %18 : vector<8x4xf32>
    %20 = math.exp %19 : vector<8x4xf32>
    %cst_16 = arith.constant 1.000000e+00 : f32
    %21 = vector.broadcast %cst_16 : f32 to vector<8x4xf32>
    %22 = arith.addf %21, %20 : vector<8x4xf32>
    %23 = arith.divf %21, %22 : vector<8x4xf32>
    %cst_17 = arith.constant dense<0xFF800000> : vector<8xf32>
    %24 = vector.multi_reduction <maximumf>, %13, %cst_17 [1] : vector<8x256xf32> to vector<8xf32>
    %25 = vector.shape_cast %24 : vector<8xf32> to vector<8x1xf32>
    %26 = vector.broadcast %25 : vector<8x1xf32> to vector<8x256xf32>
    %27 = arith.subf %13, %26 : vector<8x256xf32>
    %28 = math.exp %27 : vector<8x256xf32>
    %cst_18 = arith.constant dense<0.000000e+00> : vector<8xf32>
    %29 = vector.multi_reduction <add>, %28, %cst_18 [1] : vector<8x256xf32> to vector<8xf32>
    %30 = vector.shape_cast %29 : vector<8xf32> to vector<8x1xf32>
    %31 = vector.shape_cast %28 : vector<8x256xf32> to vector<2x4x256xf32>
    %c0_19 = arith.constant 0 : index
    %c0_20 = arith.constant 0 : index
    %c0_21 = arith.constant 0 : index
    %32 = vector.load %arg2[%c0_19, %c0_20, %c0_21] : memref<2x4x256xbf16, #tpu.memory_space<vmem>>, vector<2x1x256xbf16>
    %33 = vector.shape_cast %32 : vector<2x1x256xbf16> to vector<2x256xbf16>
    %34 = arith.extf %33 : vector<2x256xbf16> to vector<2x256xf32>
    %35 = vector.shape_cast %34 : vector<2x256xf32> to vector<2x1x256xf32>
    %36 = vector.broadcast %35 : vector<2x1x256xf32> to vector<2x4x256xf32>
    %37 = arith.mulf %31, %36 : vector<2x4x256xf32>
    %cst_22 = arith.constant dense<0.000000e+00> : vector<2x4xf32>
    %38 = vector.multi_reduction <add>, %37, %cst_22 [2] : vector<2x4x256xf32> to vector<2x4xf32>
    %c0_23 = arith.constant 0 : index
    %c1 = arith.constant 1 : index
    %c0_24 = arith.constant 0 : index
    %39 = vector.load %arg2[%c0_23, %c1, %c0_24] : memref<2x4x256xbf16, #tpu.memory_space<vmem>>, vector<2x1x256xbf16>
    %40 = vector.shape_cast %39 : vector<2x1x256xbf16> to vector<2x256xbf16>
    %41 = arith.extf %40 : vector<2x256xbf16> to vector<2x256xf32>
    %42 = vector.shape_cast %41 : vector<2x256xf32> to vector<2x1x256xf32>
    %43 = vector.broadcast %42 : vector<2x1x256xf32> to vector<2x4x256xf32>
    %44 = arith.mulf %31, %43 : vector<2x4x256xf32>
    %cst_25 = arith.constant dense<0.000000e+00> : vector<2x4xf32>
    %45 = vector.multi_reduction <add>, %44, %cst_25 [2] : vector<2x4x256xf32> to vector<2x4xf32>
    %c0_26 = arith.constant 0 : index
    %c2 = arith.constant 2 : index
    %c0_27 = arith.constant 0 : index
    %46 = vector.load %arg2[%c0_26, %c2, %c0_27] : memref<2x4x256xbf16, #tpu.memory_space<vmem>>, vector<2x1x256xbf16>
    %47 = vector.shape_cast %46 : vector<2x1x256xbf16> to vector<2x256xbf16>
    %48 = arith.extf %47 : vector<2x256xbf16> to vector<2x256xf32>
    %49 = vector.shape_cast %48 : vector<2x256xf32> to vector<2x1x256xf32>
    %50 = vector.broadcast %49 : vector<2x1x256xf32> to vector<2x4x256xf32>
    %51 = arith.mulf %31, %50 : vector<2x4x256xf32>
    %cst_28 = arith.constant dense<0.000000e+00> : vector<2x4xf32>
    %52 = vector.multi_reduction <add>, %51, %cst_28 [2] : vector<2x4x256xf32> to vector<2x4xf32>
    %c0_29 = arith.constant 0 : index
    %c3 = arith.constant 3 : index
    %c0_30 = arith.constant 0 : index
    %53 = vector.load %arg2[%c0_29, %c3, %c0_30] : memref<2x4x256xbf16, #tpu.memory_space<vmem>>, vector<2x1x256xbf16>
    %54 = vector.shape_cast %53 : vector<2x1x256xbf16> to vector<2x256xbf16>
    %55 = arith.extf %54 : vector<2x256xbf16> to vector<2x256xf32>
    %56 = vector.shape_cast %55 : vector<2x256xf32> to vector<2x1x256xf32>
    %57 = vector.broadcast %56 : vector<2x1x256xf32> to vector<2x4x256xf32>
    %58 = arith.mulf %31, %57 : vector<2x4x256xf32>
    %cst_31 = arith.constant dense<0.000000e+00> : vector<2x4xf32>
    %59 = vector.multi_reduction <add>, %58, %cst_31 [2] : vector<2x4x256xf32> to vector<2x4xf32>
    %60 = vector.shape_cast %38 : vector<2x4xf32> to vector<2x4x1xf32>
    %61 = vector.shape_cast %45 : vector<2x4xf32> to vector<2x4x1xf32>
    %62 = vector.shape_cast %52 : vector<2x4xf32> to vector<2x4x1xf32>
    %63 = vector.shape_cast %59 : vector<2x4xf32> to vector<2x4x1xf32>
    %64 = tpu.concatenate %60, %61, %62, %63 in 2 : vector<2x4x1xf32>, vector<2x4x1xf32>, vector<2x4x1xf32>, vector<2x4x1xf32> -> vector<2x4x4xf32>
    %65 = vector.shape_cast %64 : vector<2x4x4xf32> to vector<8x4xf32>
    %66 = tpu.reciprocal %30 : vector<8x1xf32> -> vector<8x1xf32>
    %67 = arith.mulf %23, %65 : vector<8x4xf32>
    %68 = vector.broadcast %66 : vector<8x1xf32> to vector<8x4xf32>
    %69 = arith.mulf %67, %68 : vector<8x4xf32>
    %c0_32 = arith.constant 0 : index
    %c0_33 = arith.constant 0 : index
    %70 = vector.load %arg9[%c0_32, %c0_33] : memref<8x4xf32, #tpu.memory_space<vmem>>, vector<8x4xf32>
    tpu.vector_store %arg9[%c0_32, %c0_33], %69 {strides = array<i32>} : memref<8x4xf32, #tpu.memory_space<vmem>>, vector<8x4xf32>,
    return
  }
  func.func @transform_0(%arg0: i32) -> (i32, i32) {
    %c0_i32 = arith.constant 0 : i32
    %c0_i32_0 = arith.constant 0 : i32
    return %arg0, %c0_i32 : i32, i32
  }
  func.func @transform_1(%arg0: i32) -> (i32, i32, i32) {
    %c0_i32 = arith.constant 0 : i32
    %c0_i32_0 = arith.constant 0 : i32
    %c0_i32_1 = arith.constant 0 : i32
    return %arg0, %c0_i32, %c0_i32_0 : i32, i32, i32
  }
  func.func @transform_2(%arg0: i32) -> (i32, i32) {
    %c0_i32 = arith.constant 0 : i32
    %c0_i32_0 = arith.constant 0 : i32
    %c0_i32_1 = arith.constant 0 : i32
    return %c0_i32, %c0_i32_0 : i32, i32
  }
  func.func @transform_3(%arg0: i32) -> (i32, i32) {
    %c0_i32 = arith.constant 0 : i32
    %c0_i32_0 = arith.constant 0 : i32
    %c0_i32_1 = arith.constant 0 : i32
    return %c0_i32, %c0_i32_0 : i32, i32
  }
  func.func @transform_4(%arg0: i32) -> (i32, i32) {
    %c0_i32 = arith.constant 0 : i32
    %c0_i32_0 = arith.constant 0 : i32
    %c0_i32_1 = arith.constant 0 : i32
    return %c0_i32, %c0_i32_0 : i32, i32
  }
  func.func @transform_5(%arg0: i32) -> (i32, i32) {
    %c0_i32 = arith.constant 0 : i32
    %c0_i32_0 = arith.constant 0 : i32
    %c0_i32_1 = arith.constant 0 : i32
    return %c0_i32, %c0_i32_0 : i32, i32
  }
  func.func @transform_6(%arg0: i32) -> (i32, i32) {
    %c0_i32 = arith.constant 0 : i32
    %c0_i32_0 = arith.constant 0 : i32
    %c0_i32_1 = arith.constant 0 : i32
    return %c0_i32, %c0_i32_0 : i32, i32
  }
  func.func @transform_7(%arg0: i32) -> (i32, i32) {
    %c0_i32 = arith.constant 0 : i32
    %c0_i32_0 = arith.constant 0 : i32
    %c0_i32_1 = arith.constant 0 : i32
    return %c0_i32, %c0_i32_0 : i32, i32
  }
  func.func @transform_8(%arg0: i32) -> (i32, i32) {
    %c0_i32 = arith.constant 0 : i32
    %c0_i32_0 = arith.constant 0 : i32
    return %arg0, %c0_i32 : i32, i32
  }
}

</mosaic_0001>

<llo_original>
// kernel: tpu_custom_call.1
$region0: #{tpu_custom_call.1}
  #allocation0 [shape = 'u32[]', space=smem, size = 0x4, offset = 0x4, fixed_abs, tag = 'smem constant byte address 0x4 - core index']
  #allocation1 [shape = 'u32[144,128]{1,0:T(1,128)}', space=vmem, size = 0x12000, scoped, tag = 'internal scratch']
  %s0 = inlined_call_operand.hbm [shape: bf16[8,64], index: 0, kind: input, shape index: {}]
  %s1 = inlined_call_operand.vmem [shape: bf16[2,4,256], index: 1, kind: input, shape index: {}]
  %s2 = inlined_call_operand.vmem [shape: bf16[64,64], index: 2, kind: input, shape index: {}]
  %s3 = inlined_call_operand.vmem [shape: f32[1,64], index: 3, kind: input, shape index: {}]
  %s4 = inlined_call_operand.hbm [shape: bf16[64,256], index: 4, kind: input, shape index: {}]
  %s5 = inlined_call_operand.vmem [shape: f32[1,256], index: 5, kind: input, shape index: {}]
  %s6 = inlined_call_operand.vmem [shape: bf16[64,4], index: 6, kind: input, shape index: {}]
  %s7 = inlined_call_operand.vmem [shape: f32[1,4], index: 7, kind: input, shape index: {}]
  %s8 = inlined_call_operand.vmem [shape: f32[8,4], index: 8, kind: output, shape index: {}]
  %s9 = sld [smem:[#allocation0]]
  $region50: #{tpu_custom_call.1} parent=0
    _
  %s11 = ssub.s32 1, %s9
  %s12 = scalar_select 0, %s11, %s9
  $region1: #{tpu_custom_call.1} parent=0
    #allocation2 [shape = 'u8[2048]{0}', space=vmem, size = 0x800, scoped, tag = 'input window, operand 0, single buffered']
    #allocation3 [shape = 's32[1]{0}', space=sflag, size = 0x4, scoped, tag = 'scoped memory for tpu_custom_call.1']
    #allocation4 [shape = 'u8[32768]{0}', space=vmem, size = 0x8000, scoped, tag = 'input window, operand 4, single buffered']
    #allocation5 [shape = 's32[1]{0}', space=sflag, size = 0x4, scoped, tag = 'scoped memory for tpu_custom_call.1']
    %13 = vsyncpa [#allocation3], 0
    %14 = vsyncpa [#allocation5], 0
    // Predicated region
    $region2: #{tpu_custom_call.1} parent=1 // pred_check
      _
    $region3: #{tpu_custom_call.1} parent=1 // pred_check_branch
      %16 = sbr.rel (0) target = $region5
    $region4: #{tpu_custom_call.1} parent=1 // pred_region
      %s18 = ssub.s32 64, 64
      %19 = vsyncadd [#allocation3], %s18
      %s21 = sshll.u32 [#allocation2], 4
      %s22 = int_to_ptr.vmem [resolvable:$true] %s21
      %24 = dma.hbm_to_vmem [thread:$0]  %s0, 64, %s22, [#allocation3]
    $region5: #{tpu_custom_call.1} parent=1 // pred_fallthru
      _
    // Predicated region
    $region6: #{tpu_custom_call.1} parent=1 // pred_check
      _
    $region7: #{tpu_custom_call.1} parent=1 // pred_check_branch
      %26 = sbr.rel (0) target = $region9
    $region8: #{tpu_custom_call.1} parent=1 // pred_region
      _
    $region9: #{tpu_custom_call.1} parent=1 // pred_fallthru
      _
    // Predicated region
    $region10: #{tpu_custom_call.1} parent=1 // pred_check
      _
    $region11: #{tpu_custom_call.1} parent=1 // pred_check_branch
      %28 = sbr.rel (0) target = $region13
    $region12: #{tpu_custom_call.1} parent=1 // pred_region
      _
    $region13: #{tpu_custom_call.1} parent=1 // pred_fallthru
      _
    // Predicated region
    $region14: #{tpu_custom_call.1} parent=1 // pred_check
      _
    $region15: #{tpu_custom_call.1} parent=1 // pred_check_branch
      %30 = sbr.rel (0) target = $region17
    $region16: #{tpu_custom_call.1} parent=1 // pred_region
      _
    $region17: #{tpu_custom_call.1} parent=1 // pred_fallthru
      _
    // Predicated region
    $region18: #{tpu_custom_call.1} parent=1 // pred_check
      _
    $region19: #{tpu_custom_call.1} parent=1 // pred_check_branch
      %32 = sbr.rel (0) target = $region21
    $region20: #{tpu_custom_call.1} parent=1 // pred_region
      %s34 = ssub.s32 1024, 1024
      %35 = vsyncadd [#allocation5], %s34
      %s36 = sshll.u32 [#allocation4], 4
      %s37 = int_to_ptr.vmem [resolvable:$true] %s36
      %42 = dma.hbm_to_vmem [thread:$0]  %s4, 1024, %s37, [#allocation5], 128, 128, 8
    $region21: #{tpu_custom_call.1} parent=1 // pred_fallthru
      _
    // Predicated region
    $region22: #{tpu_custom_call.1} parent=1 // pred_check
      _
    $region23: #{tpu_custom_call.1} parent=1 // pred_check_branch
      %44 = sbr.rel (0) target = $region25
    $region24: #{tpu_custom_call.1} parent=1 // pred_region
      _
    $region25: #{tpu_custom_call.1} parent=1 // pred_fallthru
      _
    // Predicated region
    $region26: #{tpu_custom_call.1} parent=1 // pred_check
      _
    $region27: #{tpu_custom_call.1} parent=1 // pred_check_branch
      %46 = sbr.rel (0) target = $region29
    $region28: #{tpu_custom_call.1} parent=1 // pred_region
      _
    $region29: #{tpu_custom_call.1} parent=1 // pred_fallthru
      _
    // Predicated region
    $region30: #{tpu_custom_call.1} parent=1 // pred_check
      _
    $region31: #{tpu_custom_call.1} parent=1 // pred_check_branch
      %48 = sbr.rel (0) target = $region33
    $region32: #{tpu_custom_call.1} parent=1 // pred_region
      _
    $region33: #{tpu_custom_call.1} parent=1 // pred_fallthru
      _
    // Predicated region
    $region34: #{tpu_custom_call.1} parent=1 // pred_check
      _
    $region35: #{tpu_custom_call.1} parent=1 // pred_check_branch
      %50 = sbr.rel (0) target = $region37
    $region36: #{tpu_custom_call.1} parent=1 // pred_region
      %51 = dma.done [#allocation3], 64
    $region37: #{tpu_custom_call.1} parent=1 // pred_fallthru
      _
    // Predicated region
    $region38: #{tpu_custom_call.1} parent=1 // pred_check
      _
    $region39: #{tpu_custom_call.1} parent=1 // pred_check_branch
      %53 = sbr.rel (0) target = $region41
    $region40: #{tpu_custom_call.1} parent=1 // pred_region
      %54 = dma.done [#allocation5], 1024
    $region41: #{tpu_custom_call.1} parent=1 // pred_fallthru
      _
    %v56 = vld [vmem:[#allocation2] sm:$0xf]
    %v57 = vld [vmem:[%s2] sm:$0xf]
    %v58 = vld [vmem:[%s2 + $0x4] sm:$0xf]
    %v59 = vld [vmem:[%s2 + $0x8] sm:$0xf]
    %v60 = vld [vmem:[%s2 + $0xc] sm:$0xf]
    %v61 = vld [vmem:[%s2 + $0x10] sm:$0xf]
    %v62 = vld [vmem:[%s2 + $0x14] sm:$0xf]
    %v63 = vld [vmem:[%s2 + $0x18] sm:$0xf]
    %v64 = vld [vmem:[%s2 + $0x1c] sm:$0xf]
    %v65 = vld [vmem:[%s3] sm:$0x1]
    %v67 = vlaneseq
    %v68 = vshrl.u32 %v67, 7
    %v69 = vsub.s32 0, %v68
    %v70 = vrot.slane %v65, %v69
    %v80 = vunpack.c.l.b16 %v57
    %v81 = vunpack.c.l.b16 %v58
    %v82 = vunpack.c.l.b16 %v59
    %v83 = vunpack.c.l.b16 %v60
    %v84 = vunpack.c.l.b16 %v61
    %v85 = vunpack.c.l.b16 %v62
    %v86 = vunpack.c.l.b16 %v63
    %v87 = vunpack.c.l.b16 %v64
    %v88 = vpack.c.b16 %v81, %v80
    %v89 = vpack.c.b16 %v83, %v82
    %v90 = vpack.c.b16 %v85, %v84
    %v91 = vpack.c.b16 %v87, %v86
    %vm96 = vcmask 523264
    %v98 = vsel %vm96, %v56, 0
    %100 = vmatprep.subr.bf16.mxu0 0
    %101 = vmatpush1.bf16.msra.mxu0 %v88
    %102 = vmatprep.subr.bf16.mxu0 0
    %103 = vmatpush1.bf16.msra.mxu0 %v89
    %104 = vmatprep.subr.bf16.mxu0 0
    %105 = vmatpush1.bf16.msra.mxu0 %v90
    %106 = vmatprep.subr.bf16.mxu0 0
    %107 = vmatpush1.bf16.msra.mxu0 %v91
    %108 = vmatprep.subr.bf16.mxu0 0
    %109 = vmatpush1.bf16.msra.mxu0 0
    %110 = vmatprep.subr.bf16.mxu0 0
    %111 = vmatpush1.bf16.msra.mxu0 0
    %112 = vmatprep.subr.bf16.mxu0 0
    %113 = vmatpush1.bf16.msra.mxu0 0
    %114 = vmatprep.subr.bf16.mxu0 0
    %115 = vmatpush1.bf16.msra.mxu0 0
    %116 = vmatprep.subr.bf16.mxu0 0
    %117 = vmatpush1.bf16.msra.mxu0 0
    %118 = vmatprep.subr.bf16.mxu0 0
    %119 = vmatpush1.bf16.msra.mxu0 0
    %120 = vmatprep.subr.bf16.mxu0 0
    %121 = vmatpush1.bf16.msra.mxu0 0
    %122 = vmatprep.subr.bf16.mxu0 0
    %123 = vmatpush1.bf16.msra.mxu0 0
    %124 = vmatprep.subr.bf16.mxu0 0
    %125 = vmatpush1.bf16.msra.mxu0 0
    %126 = vmatprep.subr.bf16.mxu0 0
    %127 = vmatpush1.bf16.msra.mxu0 0
    %128 = vmatprep.subr.bf16.mxu0 0
    %129 = vmatpush1.bf16.msra.mxu0 0
    %130 = vmatprep.subr.bf16.mxu0 0
    %131 = vmatpush1.bf16.msra.mxu0 0
    %132 = vmatprep.mubr.bf16.mxu0 0
    %133 = vmatmul.mubr.bf16.gmra.mrb[0].mxu0 %v98
    %v134 = vpop.f32.mrb[0].mxu0
    %v135 = vadd.f32 %v70, %v134
    %v136 = vpop.f32.mrb[0].mxu0
    %v137 = vpop.f32.mrb[0].mxu0
    %v138 = vpop.f32.mrb[0].mxu0
    %139 = vdwg.mxu0
    %v140 = vmax.f32 %v135, 0.0
    %v141 = vpack.c.bf16 %v140, %v140
    %v142 = vld [vmem:[#allocation4] sm:$0xff]
    %v143 = vld [vmem:[#allocation4 + $0x8] sm:$0xff]
    %v144 = vld [vmem:[#allocation4 + $0x10] sm:$0xff]
    %v145 = vld [vmem:[#allocation4 + $0x18] sm:$0xff]
    %v146 = vld [vmem:[#allocation4 + $0x20] sm:$0xff]
    %v147 = vld [vmem:[#allocation4 + $0x28] sm:$0xff]
    %v148 = vld [vmem:[#allocation4 + $0x30] sm:$0xff]
    %v149 = vld [vmem:[#allocation4 + $0x38] sm:$0xff]
    %v150 = vld [vmem:[%s5] sm:$0x3]
    %v152 = vlaneseq
    %v153 = vshrl.u32 %v152, 7
    %v154 = vsub.s32 0, %v153
    %v155 = vrot.slane %v150, %v154
    %v156 = vlaneseq
    %v157 = vshrl.u32 %v156, 7
    %v158 = vsub.s32 1, %v157
    %v159 = vrot.slane %v150, %v158
    %v170 = vunpack.c.l.b16 %v142
    %v171 = vunpack.c.h.b16 %v142
    %v172 = vunpack.c.l.b16 %v143
    %v173 = vunpack.c.h.b16 %v143
    %v174 = vunpack.c.l.b16 %v144
    %v175 = vunpack.c.h.b16 %v144
    %v176 = vunpack.c.l.b16 %v145
    %v177 = vunpack.c.h.b16 %v145
    %v178 = vunpack.c.l.b16 %v146
    %v179 = vunpack.c.h.b16 %v146
    %v180 = vunpack.c.l.b16 %v147
    %v181 = vunpack.c.h.b16 %v147
    %v182 = vunpack.c.l.b16 %v148
    %v183 = vunpack.c.h.b16 %v148
    %v184 = vunpack.c.l.b16 %v149
    %v185 = vunpack.c.h.b16 %v149
    %v186 = vpack.c.b16 %v172, %v170
    %v187 = vpack.c.b16 %v173, %v171
    %v188 = vpack.c.b16 %v176, %v174
    %v189 = vpack.c.b16 %v177, %v175
    %v190 = vpack.c.b16 %v180, %v178
    %v191 = vpack.c.b16 %v181, %v179
    %v192 = vpack.c.b16 %v184, %v182
    %v193 = vpack.c.b16 %v185, %v183
    %v203 = vsel %vm96, %v141, 0
    %205 = vmatprep.subr.bf16.mxu0 %v187
    %206 = vmatpush1.bf16.msra.mxu0 %v186
    %207 = vmatprep.subr.bf16.mxu0 %v189
    %208 = vmatpush1.bf16.msra.mxu0 %v188
    %209 = vmatprep.subr.bf16.mxu0 %v191
    %210 = vmatpush1.bf16.msra.mxu0 %v190
    %211 = vmatprep.subr.bf16.mxu0 %v193
    %212 = vmatpush1.bf16.msra.mxu0 %v192
    %213 = vmatprep.subr.bf16.mxu0 0
    %214 = vmatpush1.bf16.msra.mxu0 0
    %215 = vmatprep.subr.bf16.mxu0 0
    %216 = vmatpush1.bf16.msra.mxu0 0
    %217 = vmatprep.subr.bf16.mxu0 0
    %218 = vmatpush1.bf16.msra.mxu0 0
    %219 = vmatprep.subr.bf16.mxu0 0
    %220 = vmatpush1.bf16.msra.mxu0 0
    %221 = vmatprep.subr.bf16.mxu0 0
    %222 = vmatpush1.bf16.msra.mxu0 0
    %223 = vmatprep.subr.bf16.mxu0 0
    %224 = vmatpush1.bf16.msra.mxu0 0
    %225 = vmatprep.subr.bf16.mxu0 0
    %226 = vmatpush1.bf16.msra.mxu0 0
    %227 = vmatprep.subr.bf16.mxu0 0
    %228 = vmatpush1.bf16.msra.mxu0 0
    %229 = vmatprep.subr.bf16.mxu0 0
    %230 = vmatpush1.bf16.msra.mxu0 0
    %231 = vmatprep.subr.bf16.mxu0 0
    %232 = vmatpush1.bf16.msra.mxu0 0
    %233 = vmatprep.subr.bf16.mxu0 0
    %234 = vmatpush1.bf16.msra.mxu0 0
    %235 = vmatprep.subr.bf16.mxu0 0
    %236 = vmatpush1.bf16.msra.mxu0 0
    %237 = vmatprep.mubr.bf16.mxu0 0
    %238 = vmatmul.mubr.bf16.gmra.mrb[0].mxu0 %v203
    %v239 = vpop.f32.mrb[0].mxu0
    %v240 = vadd.f32 %v155, %v239
    %v241 = vpop.f32.mrb[0].mxu0
    %v242 = vadd.f32 %v159, %v241
    %v243 = vpop.f32.mrb[0].mxu0
    %v244 = vpop.f32.mrb[0].mxu0
    %245 = vdwg.mxu0
    %v246 = vld [vmem:[%s6] sm:$0xf]
    %v247 = vld [vmem:[%s6 + $0x4] sm:$0xf]
    %v248 = vld [vmem:[%s6 + $0x8] sm:$0xf]
    %v249 = vld [vmem:[%s6 + $0xc] sm:$0xf]
    %v250 = vld [vmem:[%s6 + $0x10] sm:$0xf]
    %v251 = vld [vmem:[%s6 + $0x14] sm:$0xf]
    %v252 = vld [vmem:[%s6 + $0x18] sm:$0xf]
    %v253 = vld [vmem:[%s6 + $0x1c] sm:$0xf]
    %v254 = vld [vmem:[%s7] sm:$0x1]
    %v256 = vlaneseq
    %v257 = vshrl.u32 %v256, 7
    %v258 = vsub.s32 0, %v257
    %v259 = vrot.slane %v254, %v258
    %v269 = vunpack.c.l.b16 %v246
    %v270 = vunpack.c.l.b16 %v247
    %v271 = vunpack.c.l.b16 %v248
    %v272 = vunpack.c.l.b16 %v249
    %v273 = vunpack.c.l.b16 %v250
    %v274 = vunpack.c.l.b16 %v251
    %v275 = vunpack.c.l.b16 %v252
    %v276 = vunpack.c.l.b16 %v253
    %v277 = vpack.c.b16 %v270, %v269
    %v278 = vpack.c.b16 %v272, %v271
    %v279 = vpack.c.b16 %v274, %v273
    %v280 = vpack.c.b16 %v276, %v275
    %285 = vmatprep.subr.bf16.mxu0 0
    %286 = vmatpush1.bf16.msra.mxu0 %v277
    %287 = vmatprep.subr.bf16.mxu0 0
    %288 = vmatpush1.bf16.msra.mxu0 %v278
    %289 = vmatprep.subr.bf16.mxu0 0
    %290 = vmatpush1.bf16.msra.mxu0 %v279
    %291 = vmatprep.subr.bf16.mxu0 0
    %292 = vmatpush1.bf16.msra.mxu0 %v280
    %293 = vmatprep.subr.bf16.mxu0 0
    %294 = vmatpush1.bf16.msra.mxu0 0
    %295 = vmatprep.subr.bf16.mxu0 0
    %296 = vmatpush1.bf16.msra.mxu0 0
    %297 = vmatprep.subr.bf16.mxu0 0
    %298 = vmatpush1.bf16.msra.mxu0 0
    %299 = vmatprep.subr.bf16.mxu0 0
    %300 = vmatpush1.bf16.msra.mxu0 0
    %301 = vmatprep.subr.bf16.mxu0 0
    %302 = vmatpush1.bf16.msra.mxu0 0
    %303 = vmatprep.subr.bf16.mxu0 0
    %304 = vmatpush1.bf16.msra.mxu0 0
    %305 = vmatprep.subr.bf16.mxu0 0
    %306 = vmatpush1.bf16.msra.mxu0 0
    %307 = vmatprep.subr.bf16.mxu0 0
    %308 = vmatpush1.bf16.msra.mxu0 0
    %309 = vmatprep.subr.bf16.mxu0 0
    %310 = vmatpush1.bf16.msra.mxu0 0
    %311 = vmatprep.subr.bf16.mxu0 0
    %312 = vmatpush1.bf16.msra.mxu0 0
    %313 = vmatprep.subr.bf16.mxu0 0
    %314 = vmatpush1.bf16.msra.mxu0 0
    %315 = vmatprep.subr.bf16.mxu0 0
    %316 = vmatpush1.bf16.msra.mxu0 0
    %317 = vmatprep.mubr.bf16.mxu0 0
    %318 = vmatmul.mubr.bf16.gmra.mrb[0].mxu0 %v203
    %v319 = vpop.f32.mrb[0].mxu0
    %v320 = vadd.f32 %v259, %v319
    %v321 = vpop.f32.mrb[0].mxu0
    %v322 = vpop.f32.mrb[0].mxu0
    %v323 = vpop.f32.mrb[0].mxu0
    %324 = vdwg.mxu0
    %v325 = vxor.u32 %v320, 2147483648
    %v326 = vmul.f32 %v325, 1.442695
    %v327 = vpow.pop %v326
    %v328 = vadd.f32 %v327, 1.0
    %v329 = vrcp.pop %v328
    %v330 = vmul.f32 1.0, %v329
    %v331 = vmax.f32 %v240, %v242
    %332 = vmax.xlane.f32.xlu0 %v331
    %v333 = vpop.xlane.xlu0 %332
    %v334 = vsub.f32 %v240, %v333
    %v335 = vsub.f32 %v242, %v333
    %v336 = vmul.f32 %v334, 1.442695
    %v337 = vpow.pop %v336
    %v338 = vmul.f32 %v335, 1.442695
    %v339 = vpow.pop %v338
    %v340 = vadd.f32 %v337, %v339
    %341 = vadd.xlane.f32.xlu0 %v340
    %v342 = vpop.xlane.xlu0 %341
    %v345 = vcombine.low %v337, %v339
    %v346 = vcombine.high %v337, %v339
    %v349 = vld [vmem:[%s1] sm:$0x5]
    %v350 = vld [vmem:[%s1 + $0x4] sm:$0x5]
    %v351 = vunpack.c.l.bf16 %v349
    %v352 = vunpack.c.l.bf16 %v350
    %v355 = vlaneseq
    %v356 = vshrl.u32 %v355, 7
    %v357 = vsub.s32 0, %v356
    %v358 = vrot.slane %v351, %v357
    %v359 = vlaneseq
    %v360 = vshrl.u32 %v359, 7
    %v361 = vsub.s32 4, %v360
    %v362 = vrot.slane %v351, %v361
    %v363 = vlaneseq
    %v364 = vshrl.u32 %v363, 7
    %v365 = vsub.s32 0, %v364
    %v366 = vrot.slane %v352, %v365
    %v367 = vlaneseq
    %v368 = vshrl.u32 %v367, 7
    %v369 = vsub.s32 4, %v368
    %v370 = vrot.slane %v352, %v369
    %v375 = vlaneseq
    %v376 = vshrl.u32 %v375, 7
    %v377 = vsub.s32 0, %v376
    %v378 = vrot.slane %v358, %v377
    %v379 = vlaneseq
    %v380 = vshrl.u32 %v379, 7
    %v381 = vsub.s32 0, %v380
    %v382 = vrot.slane %v362, %v381
    %v383 = vlaneseq
    %v384 = vshrl.u32 %v383, 7
    %v385 = vsub.s32 0, %v384
    %v386 = vrot.slane %v366, %v385
    %v387 = vlaneseq
    %v388 = vshrl.u32 %v387, 7
    %v389 = vsub.s32 0, %v388
    %v390 = vrot.slane %v370, %v389
    %v395 = vcombine.low %v378, %v382
    %v396 = vcombine.low %v386, %v390
    %v399 = vmul.f32 %v345, %v395
    %v400 = vmul.f32 %v346, %v396
    %v403 = vcombine.high %v399, %v399
    %v404 = vcombine.high %v400, %v400
    %vm407 = vcmask 1043456
    %v408 = vsel %vm407, %v399, 0.0
    %v409 = vsel %vm407, %v403, 0.0
    %v410 = vadd.f32 %v408, %v409
    %411 = vadd.xlane.f32.xlu0 %v410
    %v412 = vpop.xlane.xlu0 %411
    %v413 = vsel %vm407, %v400, 0.0
    %v414 = vsel %vm407, %v404, 0.0
    %v415 = vadd.f32 %v413, %v414
    %416 = vadd.xlane.f32.xlu0 %v415
    %v417 = vpop.xlane.xlu0 %416
    %v418 = vlaneseq
    %v419 = vshrl.u32 %v418, 7
    %v420 = vsub.s32 1, %v419
    %v421 = vrot.slane %v351, %v420
    %v422 = vlaneseq
    %v423 = vshrl.u32 %v422, 7
    %v424 = vsub.s32 5, %v423
    %v425 = vrot.slane %v351, %v424
    %v426 = vlaneseq
    %v427 = vshrl.u32 %v426, 7
    %v428 = vsub.s32 1, %v427
    %v429 = vrot.slane %v352, %v428
    %v430 = vlaneseq
    %v431 = vshrl.u32 %v430, 7
    %v432 = vsub.s32 5, %v431
    %v433 = vrot.slane %v352, %v432
    %v438 = vlaneseq
    %v439 = vshrl.u32 %v438, 7
    %v440 = vsub.s32 1, %v439
    %v441 = vrot.slane %v421, %v440
    %v442 = vlaneseq
    %v443 = vshrl.u32 %v442, 7
    %v444 = vsub.s32 1, %v443
    %v445 = vrot.slane %v425, %v444
    %v446 = vlaneseq
    %v447 = vshrl.u32 %v446, 7
    %v448 = vsub.s32 1, %v447
    %v449 = vrot.slane %v429, %v448
    %v450 = vlaneseq
    %v451 = vshrl.u32 %v450, 7
    %v452 = vsub.s32 1, %v451
    %v453 = vrot.slane %v433, %v452
    %v458 = vcombine.low %v441, %v445
    %v459 = vcombine.low %v449, %v453
    %v462 = vmul.f32 %v345, %v458
    %v463 = vmul.f32 %v346, %v459
    %v466 = vcombine.high %v462, %v462
    %v467 = vcombine.high %v463, %v463
    %v470 = vsel %vm407, %v462, 0.0
    %v471 = vsel %vm407, %v466, 0.0
    %v472 = vadd.f32 %v470, %v471
    %473 = vadd.xlane.f32.xlu0 %v472
    %v474 = vpop.xlane.xlu0 %473
    %v475 = vsel %vm407, %v463, 0.0
    %v476 = vsel %vm407, %v467, 0.0
    %v477 = vadd.f32 %v475, %v476
    %478 = vadd.xlane.f32.xlu0 %v477
    %v479 = vpop.xlane.xlu0 %478
    %v480 = vld [vmem:[%s1] sm:$0xa]
    %v481 = vld [vmem:[%s1 + $0x4] sm:$0xa]
    %v482 = vunpack.c.l.bf16 %v480
    %v483 = vunpack.c.l.bf16 %v481
    %v486 = vlaneseq
    %v487 = vshrl.u32 %v486, 7
    %v488 = vsub.s32 2, %v487
    %v489 = vrot.slane %v482, %v488
    %v490 = vlaneseq
    %v491 = vshrl.u32 %v490, 7
    %v492 = vsub.s32 6, %v491
    %v493 = vrot.slane %v482, %v492
    %v494 = vlaneseq
    %v495 = vshrl.u32 %v494, 7
    %v496 = vsub.s32 2, %v495
    %v497 = vrot.slane %v483, %v496
    %v498 = vlaneseq
    %v499 = vshrl.u32 %v498, 7
    %v500 = vsub.s32 6, %v499
    %v501 = vrot.slane %v483, %v500
    %v506 = vlaneseq
    %v507 = vshrl.u32 %v506, 7
    %v508 = vsub.s32 2, %v507
    %v509 = vrot.slane %v489, %v508
    %v510 = vlaneseq
    %v511 = vshrl.u32 %v510, 7
    %v512 = vsub.s32 2, %v511
    %v513 = vrot.slane %v493, %v512
    %v514 = vlaneseq
    %v515 = vshrl.u32 %v514, 7
    %v516 = vsub.s32 2, %v515
    %v517 = vrot.slane %v497, %v516
    %v518 = vlaneseq
    %v519 = vshrl.u32 %v518, 7
    %v520 = vsub.s32 2, %v519
    %v521 = vrot.slane %v501, %v520
    %v526 = vcombine.low %v509, %v513
    %v527 = vcombine.low %v517, %v521
    %v530 = vmul.f32 %v345, %v526
    %v531 = vmul.f32 %v346, %v527
    %v534 = vcombine.high %v530, %v530
    %v535 = vcombine.high %v531, %v531
    %v538 = vsel %vm407, %v530, 0.0
    %v539 = vsel %vm407, %v534, 0.0
    %v540 = vadd.f32 %v538, %v539
    %541 = vadd.xlane.f32.xlu0 %v540
    %v542 = vpop.xlane.xlu0 %541
    %v543 = vsel %vm407, %v531, 0.0
    %v544 = vsel %vm407, %v535, 0.0
    %v545 = vadd.f32 %v543, %v544
    %546 = vadd.xlane.f32.xlu0 %v545
    %v547 = vpop.xlane.xlu0 %546
    %v548 = vlaneseq
    %v549 = vshrl.u32 %v548, 7
    %v550 = vsub.s32 3, %v549
    %v551 = vrot.slane %v482, %v550
    %v552 = vlaneseq
    %v553 = vshrl.u32 %v552, 7
    %v554 = vsub.s32 7, %v553
    %v555 = vrot.slane %v482, %v554
    %v556 = vlaneseq
    %v557 = vshrl.u32 %v556, 7
    %v558 = vsub.s32 3, %v557
    %v559 = vrot.slane %v483, %v558
    %v560 = vlaneseq
    %v561 = vshrl.u32 %v560, 7
    %v562 = vsub.s32 7, %v561
    %v563 = vrot.slane %v483, %v562
    %v568 = vlaneseq
    %v569 = vshrl.u32 %v568, 7
    %v570 = vsub.s32 3, %v569
    %v571 = vrot.slane %v551, %v570
    %v572 = vlaneseq
    %v573 = vshrl.u32 %v572, 7
    %v574 = vsub.s32 3, %v573
    %v575 = vrot.slane %v555, %v574
    %v576 = vlaneseq
    %v577 = vshrl.u32 %v576, 7
    %v578 = vsub.s32 3, %v577
    %v579 = vrot.slane %v559, %v578
    %v580 = vlaneseq
    %v581 = vshrl.u32 %v580, 7
    %v582 = vsub.s32 3, %v581
    %v583 = vrot.slane %v563, %v582
    %v588 = vcombine.low %v571, %v575
    %v589 = vcombine.low %v579, %v583
    %v592 = vmul.f32 %v345, %v588
    %v593 = vmul.f32 %v346, %v589
    %v596 = vcombine.high %v592, %v592
    %v597 = vcombine.high %v593, %v593
    %v600 = vsel %vm407, %v592, 0.0
    %v601 = vsel %vm407, %v596, 0.0
    %v602 = vadd.f32 %v600, %v601
    %603 = vadd.xlane.f32.xlu0 %v602
    %v604 = vpop.xlane.xlu0 %603
    %v605 = vsel %vm407, %v593, 0.0
    %v606 = vsel %vm407, %v597, 0.0
    %v607 = vadd.f32 %v605, %v606
    %608 = vadd.xlane.f32.xlu0 %v607
    %v609 = vpop.xlane.xlu0 %608
    %vm610 = vcmask 7168
    %v611 = vsel %vm610, %v412, %v474
    %v612 = vsel %vm610, %v417, %v479
    %vm613 = vcmask 15360
    %v614 = vsel %vm613, %v611, %v542
    %v615 = vsel %vm613, %v612, %v547
    %vm616 = vcmask 23552
    %v617 = vsel %vm616, %v614, %v604
    %v618 = vsel %vm616, %v615, %v609
    %v619 = vrcp.pop %v342
    %v622 = vcombine.low %v617, %v618
    %v624 = vmul.f32 %v330, %v622
    %v625 = vmul.f32 %v624, %v619
    %vm626 = vcmask 31744
    %627 = vst.msk [vmem:[%s8] sm:$0xff] %vm626, %v625
    // Predicated region
    $region42: #{tpu_custom_call.1} parent=1 // pred_check
      _
    $region43: #{tpu_custom_call.1} parent=1 // pred_check_branch
      %629 = sbr.rel (0) target = $region45
    $region44: #{tpu_custom_call.1} parent=1 // pred_region
      _
    $region45: #{tpu_custom_call.1} parent=1 // pred_fallthru
      _
    // Predicated region
    $region46: #{tpu_custom_call.1} parent=1 // pred_check
      _
    $region47: #{tpu_custom_call.1} parent=1 // pred_check_branch
      %631 = sbr.rel (0) target = $region49
    $region48: #{tpu_custom_call.1} parent=1 // pred_region
      _
    $region49: #{tpu_custom_call.1} parent=1 // pred_fallthru
      _
    %632 = vsyncpa [#allocation3], 1
    %633 = vsyncpa [#allocation5], 1

</llo_original>
